<compile_context>
chip_gen: v7x
topology: tpu7x:2x2x1
jax: 0.10.0
libtpu: 0.0.40
codegen_flags: <defaults>
</compile_context>

<pallas_src>
import jax
import jax.numpy as jnp
import numpy as np
from jax import lax
from jax.experimental import pallas as pl
from jax.experimental.pallas import tpu as pltpu

NEG = -1.0e30  # finite "-inf" keeps all lattice arithmetic NaN-free


# --------------------------------------------------------------------------- #
# Kernel 1: log-softmax + blank/label gather (streaming phase)
# --------------------------------------------------------------------------- #
def _make_gather_kernel(T_TILE, U1, V, blank_id):
    def kernel(tgt_ref, x_ref, blank_out_ref, label_out_ref):
        x = x_ref[...].astype(jnp.float32)                       # (T_TILE, U1, V)

        # log-softmax denominator over vocab (lane reduction)
        m = jnp.max(x, axis=-1, keepdims=True)                   # (T_TILE, U1, 1)
        lse = jnp.log(jnp.sum(jnp.exp(x - m), axis=-1, keepdims=True)) + m

        # blank log-prob: static lane slice (no mask-multiply / extra reduce)
        blank_logit = x[:, :, blank_id:blank_id + 1]             # (T_TILE, U1, 1)

        # label log-prob: one broadcast compare against the (U1, 1) target row,
        # never materializing a (T*U1, V) one-hot.
        tgt = tgt_ref[...]                                       # (U1, 1) int32
        v_iota = lax.broadcasted_iota(jnp.int32, (U1, V), 1)     # (U1, V)
        sel = (v_iota == tgt)[None, :, :]                        # (1, U1, V) bool
        label_logit = jnp.sum(jnp.where(sel, x, 0.0),
                              axis=-1, keepdims=True)            # (T_TILE, U1, 1)

        blank_out_ref[...] = blank_logit - lse
        label_out_ref[...] = label_logit - lse

    return kernel


# --------------------------------------------------------------------------- #
# Kernel 2: forward DP over the (T, U+1) lattice, alpha lane-resident
# --------------------------------------------------------------------------- #
def _logaddexp(a, b):
    # single-exp form: max + log(1 + exp(-|a-b|))
    mx = jnp.maximum(a, b)
    mn = jnp.minimum(a, b)
    return mx + jnp.log(1.0 + jnp.exp(mn - mx))


def _make_dp_kernel(T, U1, U1P):
    def scan_row(base, lab, lane):
        # Solves a[u] = logaddexp(lab[u-1] + a[u-1], base[u])  (a[-1] = -inf)
        # via a log-semiring prefix scan over lanes (Hillis-Steele doubling).
        # Pair (c, b) represents the affine map  a -> logaddexp(c + a, b).
        c = jnp.where(lane == 0, NEG, pltpu.roll(lab, shift=1, axis=1))
        b = base
        d = 1
        while d < U1:                                            # ceil(log2(U1)) steps
            c_sh = jnp.where(lane < d, 0.0, pltpu.roll(c, shift=d, axis=1))
            b_sh = jnp.where(lane < d, NEG, pltpu.roll(b, shift=d, axis=1))
            b = _logaddexp(c + b_sh, b)
            c = c + c_sh
            d *= 2
        return b                                                 # = alpha row (1, U1P)

    def kernel(pred_len_ref, tgt_len_ref,                        # SMEM scalar prefetch
               blank_ref, label_ref,                             # (T, U1P) VMEM
               out_ref):                                         # (8, 128) per-b output
        bidx = pl.program_id(0)
        Tb = jnp.minimum(pred_len_ref[bidx], T)                  # clamp invalid lengths
        Ub = tgt_len_ref[bidx]
        lane = lax.broadcasted_iota(jnp.int32, (1, U1P), 1)

        # t = 0: alpha[0,0] = 0, only label transitions along u.
        base0 = jnp.where(lane == 0, 0.0, NEG).astype(jnp.float32)
        alpha0 = scan_row(base0, label_ref[0:1, :], lane)
        carry0 = alpha0 + blank_ref[0:1, :]                      # base for t=1 / final if Tb==1

        def body(t, carry):
            alpha = scan_row(carry, label_ref[pl.ds(t, 1), :], lane)
            return alpha + blank_ref[pl.ds(t, 1), :]

        # loop only over valid time rows; carry = alpha[t] + blank_lp[t]
        carry = lax.fori_loop(1, Tb, body, carry0)

        # loss_b = -(alpha[Tb-1, Ub] + blank_lp[Tb-1, Ub]) = -carry[Ub]
        loss = -jnp.sum(jnp.where(lane == Ub, carry, 0.0), axis=1, keepdims=True)
        out_ref[...] = jnp.broadcast_to(loss, out_ref.shape).astype(jnp.float32)

    return kernel


# --------------------------------------------------------------------------- #
# Wrapper (matches espnet TransLoss.forward semantics, reduction='mean')
# --------------------------------------------------------------------------- #
def trans_loss(pred_pad, target, pred_len, target_len, blank_id=0):
    in_dtype = pred_pad.dtype
    B, T, U1, V = pred_pad.shape
    U1P = 128 * ((U1 + 127) // 128)                              # lane-padded lattice width

    # targets padded with a trailing blank so the row layout matches the U+1 lattice
    tgt_pad = jnp.concatenate(
        [target.astype(jnp.int32), jnp.zeros((B, 1), jnp.int32)], axis=1)   # (B, U1)
    tgt3 = tgt_pad.reshape(B, U1, 1)

    # ---- kernel 1: tiled streaming log-softmax + gather (no wrapper f32 cast) ----
    bytes_per_t = U1 * V * 4
    T_TILE = int(max(1, min(T, (6 << 20) // max(1, bytes_per_t))))   # ~6 MiB of rows/tile
    n_tt = pl.cdiv(T, T_TILE)

    gather = _make_gather_kernel(T_TILE, U1, V, blank_id)
    lp_shape = jax.ShapeDtypeStruct((B, T, U1, 1), jnp.float32)
    blank_lp, label_lp = pl.pallas_call(
        gather,
        out_shape=(lp_shape, lp_shape),
        grid=(B, n_tt),
        in_specs=[pl.BlockSpec((None, U1, 1), lambda b, t: (b, 0, 0)),
                  pl.BlockSpec((None, T_TILE, U1, V), lambda b, t: (b, t, 0, 0))],
        out_specs=(pl.BlockSpec((None, T_TILE, U1, 1), lambda b, t: (b, t, 0, 0)),
                   pl.BlockSpec((None, T_TILE, U1, 1), lambda b, t: (b, t, 0, 0))),
        compiler_params=pltpu.CompilerParams(
            dimension_semantics=("parallel", "parallel"),
            vmem_limit_bytes=48 << 20),          # sized for v7x's 64 MiB physical VMEM
    )(tgt3, pred_pad)

    # lane-pad the (tiny) lattice log-prob tables to a roll-friendly 128-lane width
    pad = ((0, 0), (0, 0), (0, U1P - U1))
    blank2 = jnp.pad(blank_lp[..., 0], pad, constant_values=NEG)    # (B, T, U1P)
    label2 = jnp.pad(label_lp[..., 0], pad, constant_values=NEG)    # (B, T, U1P)

    # ---- kernel 2: per-utterance forward DP, batch axis parallel ----
    dp = _make_dp_kernel(T, U1, U1P)
    grid_spec = pltpu.PrefetchScalarGridSpec(
        num_scalar_prefetch=2,                                   # pred_len, target_len
        grid=(B,),
        in_specs=[pl.BlockSpec((None, T, U1P), lambda b, *p: (b, 0, 0)),
                  pl.BlockSpec((None, T, U1P), lambda b, *p: (b, 0, 0))],
        out_specs=pl.BlockSpec((None, 8, 128), lambda b, *p: (b, 0, 0)),
    )
    per_b = pl.pallas_call(
        dp,
        out_shape=jax.ShapeDtypeStruct((B, 8, 128), jnp.float32),
        grid_spec=grid_spec,
        compiler_params=pltpu.CompilerParams(
            dimension_semantics=("parallel",)),
    )(pred_len.astype(jnp.int32), target_len.astype(jnp.int32), blank2, label2)

    # mean over the batch done once in the wrapper (matches torch 'mean' rounding)
    loss = jnp.mean(per_b[:, 0, 0])
    return loss.astype(in_dtype)                                 # cast back like the module

    # TODO(synk): for U+1 > 128 the pltpu.roll-based scan spans multiple vregs on the
    # lane axis; if that path ever fails to lower, fall back to a 128-wide segmented scan.


# --------------------------------------------------------------------------- #
# Pure numpy reference (float64) of the RNNT forward algorithm, mean over batch
# --------------------------------------------------------------------------- #
def _rnnt_loss_ref(logits, targets, pred_len, target_len, blank_id):
    logits = np.asarray(logits, np.float64)
    m = logits.max(-1, keepdims=True)
    lp = logits - (np.log(np.exp(logits - m).sum(-1, keepdims=True)) + m)
    B = logits.shape[0]
    losses = []
    for b in range(B):
        Tb, Ub = int(pred_len[b]), int(target_len[b])
        alpha = np.full((Tb, Ub + 1), -np.inf)
        alpha[0, 0] = 0.0
        for t in range(Tb):
            for u in range(Ub + 1):
                if t == 0 and u == 0:
                    continue
                a = alpha[t - 1, u] + lp[b, t - 1, u, blank_id] if t > 0 else -np.inf
                c = (alpha[t, u - 1] + lp[b, t, u - 1, int(targets[b, u - 1])]
                     if u > 0 else -np.inf)
                alpha[t, u] = np.logaddexp(a, c)
        losses.append(-(alpha[Tb - 1, Ub] + lp[b, Tb - 1, Ub, blank_id]))
    return float(np.mean(losses))


if __name__ == "__main__":
    key = jax.random.PRNGKey(0)
    B, T, U, V = 2, 8, 4, 128          # batch, maxlen_in, maxlen_out, odim
    blank_id = 0

    k1, k2 = jax.random.split(key)
    pred_pad = jax.random.normal(k1, (B, T, U + 1, V), dtype=jnp.float32)
    target = jax.random.randint(k2, (B, U), 1, V, dtype=jnp.int32)   # non-blank labels
    pred_len = jnp.array([T, T - 2], dtype=jnp.int32)
    target_len = jnp.array([U, U - 1], dtype=jnp.int32)

    loss = trans_loss(pred_pad, target, pred_len, target_len, blank_id)
    loss = jax.block_until_ready(loss)

    ref = _rnnt_loss_ref(np.asarray(pred_pad), np.asarray(target),
                         np.asarray(pred_len), np.asarray(target_len), blank_id)
    assert np.allclose(float(loss), ref, rtol=2e-3, atol=2e-3), (float(loss), ref)
    print("KERNEL_OK")
</pallas_src>

<mosaic_0001>
module attributes {stable_mosaic.version = 11 : i64} {
  func.func @kernel(%arg0: i32, %arg1: i32, %arg2: memref<1x5x1xi32, #tpu.memory_space<vmem>>, %arg3: memref<1x8x5x128xf32, #tpu.memory_space<vmem>>, %arg4: memref<1x8x5x1xf32, #tpu.memory_space<vmem>>, %arg5: memref<1x8x5x1xf32, #tpu.memory_space<vmem>>) attributes {dimension_semantics = [#tpu.dimension_semantics<parallel>, #tpu.dimension_semantics<parallel>], iteration_bounds = array<i64: 2, 1>, scalar_prefetch = 0 : i64, scratch_operands = 0 : i64, tpu.core_type = #tpu.core_type<tc>, window_params = [{transform_indices = @transform_0, window_bounds = array<i64: 1, 5, 1>}, {transform_indices = @transform_1, window_bounds = array<i64: 1, 8, 5, 128>}, {transform_indices = @transform_2, window_bounds = array<i64: 1, 8, 5, 1>}, {transform_indices = @transform_3, window_bounds = array<i64: 1, 8, 5, 1>}]} {
    %c0 = arith.constant 0 : index
    %c0_0 = arith.constant 0 : index
    %c0_1 = arith.constant 0 : index
    %c0_2 = arith.constant 0 : index
    %0 = vector.load %arg3[%c0, %c0_0, %c0_1, %c0_2] : memref<1x8x5x128xf32, #tpu.memory_space<vmem>>, vector<1x8x5x128xf32>
    %1 = vector.shape_cast %0 : vector<1x8x5x128xf32> to vector<8x5x128xf32>
    %cst = arith.constant dense<0xFF800000> : vector<8x5xf32>
    %2 = vector.multi_reduction <maximumf>, %1, %cst [2] : vector<8x5x128xf32> to vector<8x5xf32>
    %3 = vector.shape_cast %2 : vector<8x5xf32> to vector<8x5x1xf32>
    %4 = vector.broadcast %3 : vector<8x5x1xf32> to vector<8x5x128xf32>
    %5 = arith.subf %1, %4 : vector<8x5x128xf32>
    %6 = math.exp %5 : vector<8x5x128xf32>
    %cst_3 = arith.constant dense<0.000000e+00> : vector<8x5xf32>
    %7 = vector.multi_reduction <add>, %6, %cst_3 [2] : vector<8x5x128xf32> to vector<8x5xf32>
    %8 = vector.shape_cast %7 : vector<8x5xf32> to vector<8x5x1xf32>
    %9 = math.log %8 : vector<8x5x1xf32>
    %10 = arith.addf %9, %3 : vector<8x5x1xf32>
    %11 = vector.extract_strided_slice %1 {offsets = [0, 0, 0], sizes = [8, 5, 1], strides = [1, 1, 1]} : vector<8x5x128xf32> to vector<8x5x1xf32>
    %c0_4 = arith.constant 0 : index
    %c0_5 = arith.constant 0 : index
    %c0_6 = arith.constant 0 : index
    %12 = vector.load %arg2[%c0_4, %c0_5, %c0_6] : memref<1x5x1xi32, #tpu.memory_space<vmem>>, vector<1x5x1xi32>
    %13 = vector.shape_cast %12 : vector<1x5x1xi32> to vector<5x1xi32>
    %14 = tpu.iota {dimensions = array<i32: 1>} : vector<5x128xi32>
    %15 = vector.broadcast %13 : vector<5x1xi32> to vector<5x128xi32>
    %16 = arith.cmpi eq, %14, %15 : vector<5x128xi32>
    %17 = vector.shape_cast %16 : vector<5x128xi1> to vector<1x5x128xi1>
    %cst_7 = arith.constant 0.000000e+00 : f32
    %18 = vector.shape_cast %17 : vector<1x5x128xi1> to vector<1x5x128xi1>
    %19 = vector.broadcast %18 : vector<1x5x128xi1> to vector<8x5x128xi1>
    %20 = vector.broadcast %cst_7 : f32 to vector<8x5x128xf32>
    %21 = arith.select %19, %1, %20 : vector<8x5x128xi1>, vector<8x5x128xf32>
    %cst_8 = arith.constant dense<0.000000e+00> : vector<8x5xf32>
    %22 = vector.multi_reduction <add>, %21, %cst_8 [2] : vector<8x5x128xf32> to vector<8x5xf32>
    %23 = vector.shape_cast %22 : vector<8x5xf32> to vector<8x5x1xf32>
    %24 = arith.subf %11, %10 : vector<8x5x1xf32>
    %c0_9 = arith.constant 0 : index
    %c0_10 = arith.constant 0 : index
    %c0_11 = arith.constant 0 : index
    %c0_12 = arith.constant 0 : index
    %25 = vector.load %arg4[%c0_9, %c0_10, %c0_11, %c0_12] : memref<1x8x5x1xf32, #tpu.memory_space<vmem>>, vector<1x8x5x1xf32>
    %26 = vector.shape_cast %25 : vector<1x8x5x1xf32> to vector<8x5x1xf32>
    %27 = vector.shape_cast %24 : vector<8x5x1xf32> to vector<1x8x5x1xf32>
    tpu.vector_store %arg4[%c0_9, %c0_10, %c0_11, %c0_12], %27 {strides = array<i32>} : memref<1x8x5x1xf32, #tpu.memory_space<vmem>>, vector<1x8x5x1xf32>,
    %28 = arith.subf %23, %10 : vector<8x5x1xf32>
    %c0_13 = arith.constant 0 : index
    %c0_14 = arith.constant 0 : index
    %c0_15 = arith.constant 0 : index
    %c0_16 = arith.constant 0 : index
    %29 = vector.load %arg5[%c0_13, %c0_14, %c0_15, %c0_16] : memref<1x8x5x1xf32, #tpu.memory_space<vmem>>, vector<1x8x5x1xf32>
    %30 = vector.shape_cast %29 : vector<1x8x5x1xf32> to vector<8x5x1xf32>
    %31 = vector.shape_cast %28 : vector<8x5x1xf32> to vector<1x8x5x1xf32>
    tpu.vector_store %arg5[%c0_13, %c0_14, %c0_15, %c0_16], %31 {strides = array<i32>} : memref<1x8x5x1xf32, #tpu.memory_space<vmem>>, vector<1x8x5x1xf32>,
    return
  }
  func.func @transform_0(%arg0: i32, %arg1: i32) -> (i32, i32, i32) {
    %c0_i32 = arith.constant 0 : i32
    %c0_i32_0 = arith.constant 0 : i32
    %c0_i32_1 = arith.constant 0 : i32
    return %arg0, %c0_i32, %c0_i32_0 : i32, i32, i32
  }
  func.func @transform_1(%arg0: i32, %arg1: i32) -> (i32, i32, i32, i32) {
    %c0_i32 = arith.constant 0 : i32
    %c0_i32_0 = arith.constant 0 : i32
    %c0_i32_1 = arith.constant 0 : i32
    return %arg0, %arg1, %c0_i32, %c0_i32_0 : i32, i32, i32, i32
  }
  func.func @transform_2(%arg0: i32, %arg1: i32) -> (i32, i32, i32, i32) {
    %c0_i32 = arith.constant 0 : i32
    %c0_i32_0 = arith.constant 0 : i32
    %c0_i32_1 = arith.constant 0 : i32
    return %arg0, %arg1, %c0_i32, %c0_i32_0 : i32, i32, i32, i32
  }
  func.func @transform_3(%arg0: i32, %arg1: i32) -> (i32, i32, i32, i32) {
    %c0_i32 = arith.constant 0 : i32
    %c0_i32_0 = arith.constant 0 : i32
    %c0_i32_1 = arith.constant 0 : i32
    return %arg0, %arg1, %c0_i32, %c0_i32_0 : i32, i32, i32, i32
  }
}

</mosaic_0001>

<llo_original>
// kernel: tpu_custom_call.1
$region0: #{tpu_custom_call.1}
  #allocation0 [shape = 'u32[]', space=smem, size = 0x4, offset = 0x4, fixed_abs, tag = 'smem constant byte address 0x4 - core index']
  #allocation1 [shape = 'u32[144,128]{1,0:T(1,128)}', space=vmem, size = 0x12000, scoped, tag = 'internal scratch']
  %s0 = inlined_call_operand.vmem [shape: s32[2,5,1], index: 0, kind: input, shape index: {}]
  %s1 = inlined_call_operand.vmem [shape: f32[2,8,5,128], index: 1, kind: input, shape index: {}]
  %s2 = inlined_call_operand.vmem [shape: f32[2,8,5,1], index: 2, kind: output, shape index: {0}]
  %s3 = inlined_call_operand.vmem [shape: f32[2,8,5,1], index: 3, kind: output, shape index: {1}]
  %4 = xla_tuple %s2, %s3
  %s5 = sld [smem:[#allocation0]]
  $region49: #{tpu_custom_call.1} parent=0
    _
  %s7 = ssub.s32 1, %s5
  %s8 = scalar_select 0, %s7, %s5
  loop: start=0, step=1, limit=4
  $region2: #{tpu_custom_call.1} parent=0 // loop_pre_header
    _
  $region3: #{tpu_custom_call.1} parent=0 // loop_header
    %s10 = sphi 0, %s14
    %p11 = scmp.ge.s32.totalorder %s10, 4
    %s17 = sphi 0, %s29
    %s18 = sphi 0, %s25
    %s19 = sphi 0, %s17
    %s20 = sphi 0, %s18
    %s21 = sphi 0, %s19
    %s22 = sphi 0, %s20
    %s32 = sphi 0, %s34
    %s35 = sphi 0, %s32
    %s36 = sphi 0, %s35
    %s52 = sphi 0, %s36
    %s60 = sphi 0, %s62
    %s63 = sphi 0, %s60
    %s64 = sphi 0, %s63
    %s80 = sphi 0, %s64
    %s88 = sphi 0, %s90
    %s91 = sphi 0, %s88
    %s92 = sphi 0, %s91
    %s108 = sphi 0, %s92
    %s116 = sphi 0, %s118
    %s119 = sphi 0, %s116
    %s120 = sphi 0, %s119
    %s136 = sphi 0, %s120
  $region4: #{tpu_custom_call.1} parent=0 // loop_header_branch
    %13 = sbr.rel (%p11) target = $region8
  $region5: #{tpu_custom_call.1} parent=0 // loop_body
    %s15 = ssub.s32 %s10, 1
    %s16 = ssub.s32 %s10, 2
    %s23 = sadd.s32 1, %s18
    %p24 = scmp.ge.s32.totalorder %s23, 1
    %s25 = scalar_select %p24, 0, %s23
    %s26 = sadd.s32 1, %s17
    %s27 = scalar_select %p24, %s26, %s17
    %p28 = scmp.ge.s32.totalorder %s27, 2
    %s29 = scalar_select %p28, 0, %s27
    %s30 = ssub.s32 %s17, %s29
    %p31 = scmp.eq.s32.totalorder %s30, 0
    %s33 = sadd.s32 %s32, 1
    %s34 = scalar_select %p31, %s32, %s33
    %p37 = pneg %p31
    %p38 = scmp.eq.s32.totalorder %s10, 1
    %p39 = por %p37, %p38
    %p40 = scmp.ne.s32.totalorder %s32, %s35
    %p41 = scmp.eq.s32.totalorder %s10, 0
    %p42 = por %p40, %p41
    %p43 = scmp.ne.s32.totalorder %s32, %s35
    %p44 = scmp.eq.s32.totalorder %s15, 1
    %p45 = por %p43, %p44
    %p46 = scmp.ne.s32.totalorder %s35, %s36
    %p47 = scmp.eq.s32.totalorder %s15, 0
    %p48 = por %p46, %p47
    %p49 = scmp.ne.s32.totalorder %s35, %s36
    %p50 = scmp.eq.s32.totalorder %s16, 1
    %p51 = por %p49, %p50
    %p53 = scmp.ne.s32.totalorder %s36, %s52
    %p54 = scmp.eq.s32.totalorder %s16, 0
    %p55 = por %p53, %p54
    %s56 = ssub.s32 %s17, %s29
    %s57 = ssub.s32 %s18, %s25
    %s58 = sor.u32 %s56, %s57
    %p59 = scmp.eq.s32.totalorder %s58, 0
    %s61 = sadd.s32 %s60, 1
    %s62 = scalar_select %p59, %s60, %s61
    %p65 = pneg %p59
    %p66 = scmp.eq.s32.totalorder %s10, 1
    %p67 = por %p65, %p66
    %p68 = scmp.ne.s32.totalorder %s60, %s63
    %p69 = scmp.eq.s32.totalorder %s10, 0
    %p70 = por %p68, %p69
    %p71 = scmp.ne.s32.totalorder %s60, %s63
    %p72 = scmp.eq.s32.totalorder %s15, 1
    %p73 = por %p71, %p72
    %p74 = scmp.ne.s32.totalorder %s63, %s64
    %p75 = scmp.eq.s32.totalorder %s15, 0
    %p76 = por %p74, %p75
    %p77 = scmp.ne.s32.totalorder %s63, %s64
    %p78 = scmp.eq.s32.totalorder %s16, 1
    %p79 = por %p77, %p78
    %p81 = scmp.ne.s32.totalorder %s64, %s80
    %p82 = scmp.eq.s32.totalorder %s16, 0
    %p83 = por %p81, %p82
    %s84 = ssub.s32 %s17, %s29
    %s85 = ssub.s32 %s18, %s25
    %s86 = sor.u32 %s84, %s85
    %p87 = scmp.eq.s32.totalorder %s86, 0
    %s89 = sadd.s32 %s88, 1
    %s90 = scalar_select %p87, %s88, %s89
    %p93 = pneg %p87
    %p94 = scmp.eq.s32.totalorder %s10, 1
    %p95 = por %p93, %p94
    %p96 = scmp.ne.s32.totalorder %s88, %s91
    %p97 = scmp.eq.s32.totalorder %s10, 0
    %p98 = por %p96, %p97
    %p99 = scmp.ne.s32.totalorder %s88, %s91
    %p100 = scmp.eq.s32.totalorder %s15, 1
    %p101 = por %p99, %p100
    %p102 = scmp.ne.s32.totalorder %s91, %s92
    %p103 = scmp.eq.s32.totalorder %s15, 0
    %p104 = por %p102, %p103
    %p105 = scmp.ne.s32.totalorder %s91, %s92
    %p106 = scmp.eq.s32.totalorder %s16, 1
    %p107 = por %p105, %p106
    %p109 = scmp.ne.s32.totalorder %s92, %s108
    %p110 = scmp.eq.s32.totalorder %s16, 0
    %p111 = por %p109, %p110
    %s112 = ssub.s32 %s17, %s29
    %s113 = ssub.s32 %s18, %s25
    %s114 = sor.u32 %s112, %s113
    %p115 = scmp.eq.s32.totalorder %s114, 0
    %s117 = sadd.s32 %s116, 1
    %s118 = scalar_select %p115, %s116, %s117
    %p121 = pneg %p115
    %p122 = scmp.eq.s32.totalorder %s10, 1
    %p123 = por %p121, %p122
    %p124 = scmp.ne.s32.totalorder %s116, %s119
    %p125 = scmp.eq.s32.totalorder %s10, 0
    %p126 = por %p124, %p125
    %p127 = scmp.ne.s32.totalorder %s116, %s119
    %p128 = scmp.eq.s32.totalorder %s15, 1
    %p129 = por %p127, %p128
    %p130 = scmp.ne.s32.totalorder %s119, %s120
    %p131 = scmp.eq.s32.totalorder %s15, 0
    %p132 = por %p130, %p131
    %p133 = scmp.ne.s32.totalorder %s119, %s120
    %p134 = scmp.eq.s32.totalorder %s16, 1
    %p135 = por %p133, %p134
    %p137 = scmp.ne.s32.totalorder %s120, %s136
    %p138 = scmp.eq.s32.totalorder %s16, 0
    %p139 = por %p137, %p138
    %p140 = scmp.le.s32.totalorder 1, %s10
    %p141 = scmp.lt.s32.totalorder %s10, 3
    %p142 = pnand %p140, %p141
    %p143 = pneg %p142
    // Predicated region
    $region9: #{tpu_custom_call.1} parent=5 // pred_check
      _
    $region10: #{tpu_custom_call.1} parent=5 // pred_check_branch
      %145 = sbr.rel (%p142) target = $region12
    $region11: #{tpu_custom_call.1} parent=5 // pred_region
      %s146 = ssub.s32 %s10, 1
    $region12: #{tpu_custom_call.1} parent=5 // pred_fallthru
      _
    %p147 = scmp.lt.s32.totalorder %s10, 2
    // Predicated region
    $region13: #{tpu_custom_call.1} parent=5 // pred_check
      %p148 = pneg %p147
    $region14: #{tpu_custom_call.1} parent=5 // pred_check_branch
      %150 = sbr.rel (%p148) target = $region16
    $region15: #{tpu_custom_call.1} parent=5 // pred_region
      // Predicated region
      $region17: #{tpu_custom_call.1} parent=15 // pred_check
        %p151 = pneg %p42
      $region18: #{tpu_custom_call.1} parent=15 // pred_check_branch
        %153 = sbr.rel (%p151) target = $region20
      $region19: #{tpu_custom_call.1} parent=15 // pred_region
        %p154 = scmp.lt.s32.totalorder %s17, 1
        %s155 = scalar_select %p154, %s17, 1
        %s156 = smul.addr %s155, 8
        %s157 = scalar_lea.vmem %s0, %s156
      $region20: #{tpu_custom_call.1} parent=15 // pred_fallthru
        _
      // Predicated region
      $region21: #{tpu_custom_call.1} parent=15 // pred_check
        %p158 = pneg %p70
      $region22: #{tpu_custom_call.1} parent=15 // pred_check_branch
        %160 = sbr.rel (%p158) target = $region24
      $region23: #{tpu_custom_call.1} parent=15 // pred_region
        %s161 = smul.u32 8, %s18
        %p162 = scmp.lt.s32.totalorder %s17, 1
        %s163 = scalar_select %p162, %s17, 1
        %p164 = scmp.lt.s32.totalorder %s161, 7
        %s165 = scalar_select %p164, %s161, 7
        %s166 = smul.addr %s163, 8
        %s167 = sadd.s32 %s165, %s166
        %s168 = smul.addr %s167, 8
        %s169 = scalar_lea.vmem %s1, %s168
        %s170 = smul.u32 8, %s18
      $region24: #{tpu_custom_call.1} parent=15 // pred_fallthru
        _
    $region16: #{tpu_custom_call.1} parent=5 // pred_fallthru
      _
    %p171 = scmp.le.s32.totalorder 1, %s10
    %p172 = scmp.lt.s32.totalorder %s10, 3
    %p173 = pnand %p171, %p172
    %p174 = pneg %p173
    // Predicated region
    $region25: #{tpu_custom_call.1} parent=5 // pred_check
      _
    $region26: #{tpu_custom_call.1} parent=5 // pred_check_branch
      %176 = sbr.rel (%p173) target = $region28
    $region27: #{tpu_custom_call.1} parent=5 // pred_region
      %s177 = ssub.s32 %s10, 1
      %p178 = scmp.lt.s32.totalorder %s19, 1
      %s179 = scalar_select %p178, %s19, 1
      %s180 = smul.addr %s179, 8
      %s181 = scalar_lea.vmem %s0, %s180
      %p182 = pneg %p48
      %p183 = pneg %p45
      %s184 = smul.u32 8, %s20
      %p185 = scmp.lt.s32.totalorder %s19, 1
      %s186 = scalar_select %p185, %s19, 1
      %p187 = scmp.lt.s32.totalorder %s184, 7
      %s188 = scalar_select %p187, %s184, 7
      %s189 = smul.addr %s186, 8
      %s190 = sadd.s32 %s188, %s189
      %s191 = smul.addr %s190, 8
      %s192 = scalar_lea.vmem %s1, %s191
      %p193 = pneg %p76
      %p194 = pneg %p73
      %p195 = pneg %p104
      %p196 = pneg %p101
      %s197 = smul.u32 8, %s20
      %p198 = scmp.lt.s32.totalorder %s19, 1
      %s199 = scalar_select %p198, %s19, 1
      %p200 = scmp.lt.s32.totalorder %s197, 7
      %s201 = scalar_select %p200, %s197, 7
      %s202 = smul.addr %s199, 8
      %s203 = sadd.s32 %s201, %s202
      %s204 = smul.addr %s203, 8
      %s205 = scalar_lea.vmem %s2, %s204
      %p206 = pneg %p132
      %p207 = pneg %p129
      %s208 = smul.u32 8, %s20
      %p209 = scmp.lt.s32.totalorder %s19, 1
      %s210 = scalar_select %p209, %s19, 1
      %p211 = scmp.lt.s32.totalorder %s208, 7
      %s212 = scalar_select %p211, %s208, 7
      %s213 = smul.addr %s210, 8
      %s214 = sadd.s32 %s212, %s213
      %s215 = smul.addr %s214, 8
      %s216 = scalar_lea.vmem %s3, %s215
      %p217 = scmp.lt.s32.totalorder %s19, 1
      %s218 = scalar_select %p217, %s19, 1
      %s219 = smul.addr %s218, 8
      %s220 = scalar_lea.vmem %s0, %s219
      %s221 = smul.u32 8, %s20
      %p222 = scmp.lt.s32.totalorder %s19, 1
      %s223 = scalar_select %p222, %s19, 1
      %p224 = scmp.lt.s32.totalorder %s221, 7
      %s225 = scalar_select %p224, %s221, 7
      %s226 = smul.addr %s223, 8
      %s227 = sadd.s32 %s225, %s226
      %s228 = smul.addr %s227, 8
      %s229 = scalar_lea.vmem %s1, %s228
      %s230 = smul.u32 8, %s20
      %s231 = smul.u32 8, %s20
      %p232 = scmp.lt.s32.totalorder %s19, 1
      %s233 = scalar_select %p232, %s19, 1
      %p234 = scmp.lt.s32.totalorder %s231, 7
      %s235 = scalar_select %p234, %s231, 7
      %s236 = smul.addr %s233, 8
      %s237 = sadd.s32 %s235, %s236
      %s238 = smul.addr %s237, 8
      %s239 = scalar_lea.vmem %s2, %s238
      %s240 = smul.u32 8, %s20
      %s241 = smul.u32 8, %s20
      %p242 = scmp.lt.s32.totalorder %s19, 1
      %s243 = scalar_select %p242, %s19, 1
      %p244 = scmp.lt.s32.totalorder %s241, 7
      %s245 = scalar_select %p244, %s241, 7
      %s246 = smul.addr %s243, 8
      %s247 = sadd.s32 %s245, %s246
      %s248 = smul.addr %s247, 8
      %s249 = scalar_lea.vmem %s3, %s248
      %s250 = smul.u32 8, %s20
      %v251 = vld [vmem:[%s229] sm:$0x1f]
      %v252 = vld [vmem:[%s229 + $0x8] sm:$0x1f]
      %v253 = vld [vmem:[%s229 + $0x10] sm:$0x1f]
      %v254 = vld [vmem:[%s229 + $0x18] sm:$0x1f]
      %v255 = vld [vmem:[%s229 + $0x20] sm:$0x1f]
      %v256 = vld [vmem:[%s229 + $0x28] sm:$0x1f]
      %v257 = vld [vmem:[%s229 + $0x30] sm:$0x1f]
      %v258 = vld [vmem:[%s229 + $0x38] sm:$0x1f]
      %vm259 = vcmask 1044480
      %v260 = vsel %vm259, %v251, -inf
      %261 = vmax.xlane.f32.xlu0 %v260
      %v262 = vpop.xlane.xlu0 %261
      %v263 = vsel %vm259, %v252, -inf
      %264 = vmax.xlane.f32.xlu0 %v263
      %v265 = vpop.xlane.xlu0 %264
      %v266 = vsel %vm259, %v253, -inf
      %267 = vmax.xlane.f32.xlu0 %v266
      %v268 = vpop.xlane.xlu0 %267
      %v269 = vsel %vm259, %v254, -inf
      %270 = vmax.xlane.f32.xlu0 %v269
      %v271 = vpop.xlane.xlu0 %270
      %v272 = vsel %vm259, %v255, -inf
      %273 = vmax.xlane.f32.xlu0 %v272
      %v274 = vpop.xlane.xlu0 %273
      %v275 = vsel %vm259, %v256, -inf
      %276 = vmax.xlane.f32.xlu0 %v275
      %v277 = vpop.xlane.xlu0 %276
      %v278 = vsel %vm259, %v257, -inf
      %279 = vmax.xlane.f32.xlu0 %v278
      %v280 = vpop.xlane.xlu0 %279
      %v281 = vsel %vm259, %v258, -inf
      %282 = vmax.xlane.f32.xlu0 %v281
      %v283 = vpop.xlane.xlu0 %282
      %v284 = vsub.f32 %v251, %v262
      %v285 = vsub.f32 %v252, %v265
      %v286 = vsub.f32 %v253, %v268
      %v287 = vsub.f32 %v254, %v271
      %v288 = vsub.f32 %v255, %v274
      %v289 = vsub.f32 %v256, %v277
      %v290 = vsub.f32 %v257, %v280
      %v291 = vsub.f32 %v258, %v283
      %v292 = vmul.f32 %v284, 1.442695
      %v293 = vpow.pop %v292
      %v294 = vmul.f32 %v285, 1.442695
      %v295 = vpow.pop %v294
      %v296 = vmul.f32 %v286, 1.442695
      %v297 = vpow.pop %v296
      %v298 = vmul.f32 %v287, 1.442695
      %v299 = vpow.pop %v298
      %v300 = vmul.f32 %v288, 1.442695
      %v301 = vpow.pop %v300
      %v302 = vmul.f32 %v289, 1.442695
      %v303 = vpow.pop %v302
      %v304 = vmul.f32 %v290, 1.442695
      %v305 = vpow.pop %v304
      %v306 = vmul.f32 %v291, 1.442695
      %v307 = vpow.pop %v306
      %v308 = vsel %vm259, %v293, 0.0
      %309 = vadd.xlane.f32.xlu0 %v308
      %v310 = vpop.xlane.xlu0 %309
      %v311 = vsel %vm259, %v295, 0.0
      %312 = vadd.xlane.f32.xlu0 %v311
      %v313 = vpop.xlane.xlu0 %312
      %v314 = vsel %vm259, %v297, 0.0
      %315 = vadd.xlane.f32.xlu0 %v314
      %v316 = vpop.xlane.xlu0 %315
      %v317 = vsel %vm259, %v299, 0.0
      %318 = vadd.xlane.f32.xlu0 %v317
      %v319 = vpop.xlane.xlu0 %318
      %v320 = vsel %vm259, %v301, 0.0
      %321 = vadd.xlane.f32.xlu0 %v320
      %v322 = vpop.xlane.xlu0 %321
      %v323 = vsel %vm259, %v303, 0.0
      %324 = vadd.xlane.f32.xlu0 %v323
      %v325 = vpop.xlane.xlu0 %324
      %v326 = vsel %vm259, %v305, 0.0
      %327 = vadd.xlane.f32.xlu0 %v326
      %v328 = vpop.xlane.xlu0 %327
      %v329 = vsel %vm259, %v307, 0.0
      %330 = vadd.xlane.f32.xlu0 %v329
      %v331 = vpop.xlane.xlu0 %330
      %v332 = vlog2.pop %v310
      %v333 = vmul.f32 %v332, 0.6931472
      %v334 = vlog2.pop %v313
      %v335 = vmul.f32 %v334, 0.6931472
      %v336 = vlog2.pop %v316
      %v337 = vmul.f32 %v336, 0.6931472
      %v338 = vlog2.pop %v319
      %v339 = vmul.f32 %v338, 0.6931472
      %v340 = vlog2.pop %v322
      %v341 = vmul.f32 %v340, 0.6931472
      %v342 = vlog2.pop %v325
      %v343 = vmul.f32 %v342, 0.6931472
      %v344 = vlog2.pop %v328
      %v345 = vmul.f32 %v344, 0.6931472
      %v346 = vlog2.pop %v331
      %v347 = vmul.f32 %v346, 0.6931472
      %v348 = vadd.f32 %v333, %v262
      %v349 = vadd.f32 %v335, %v265
      %v350 = vadd.f32 %v337, %v268
      %v351 = vadd.f32 %v339, %v271
      %v352 = vadd.f32 %v341, %v274
      %v353 = vadd.f32 %v343, %v277
      %v354 = vadd.f32 %v345, %v280
      %v355 = vadd.f32 %v347, %v283
      %v356 = vld [vmem:[%s220] sm:$0x1f]
      %v357 = vlaneseq
      %v358 = vand.u32 %v357, 127
      %359 = vset.pattern.permute.xlu0 0
      %360 = vperm.xlu0 %359, %v356
      %v361 = vpop.permute.xlu0 %360
      %vm362 = vcmp.eq.s32.totalorder %v358, %v361
      %v363 = vsel %vm362, 1, 0
      %vm364 = vcmp.eq.s32.totalorder %v363, 1
      %v365 = vsel %vm364, %v251, 0.0
      %v366 = vsel %vm364, %v252, 0.0
      %v367 = vsel %vm364, %v253, 0.0
      %v368 = vsel %vm364, %v254, 0.0
      %v369 = vsel %vm364, %v255, 0.0
      %v370 = vsel %vm364, %v256, 0.0
      %v371 = vsel %vm364, %v257, 0.0
      %v372 = vsel %vm364, %v258, 0.0
      %v373 = vsel %vm259, %v365, 0.0
      %374 = vadd.xlane.f32.xlu0 %v373
      %v375 = vpop.xlane.xlu0 %374
      %v376 = vsel %vm259, %v366, 0.0
      %377 = vadd.xlane.f32.xlu0 %v376
      %v378 = vpop.xlane.xlu0 %377
      %v379 = vsel %vm259, %v367, 0.0
      %380 = vadd.xlane.f32.xlu0 %v379
      %v381 = vpop.xlane.xlu0 %380
      %v382 = vsel %vm259, %v368, 0.0
      %383 = vadd.xlane.f32.xlu0 %v382
      %v384 = vpop.xlane.xlu0 %383
      %v385 = vsel %vm259, %v369, 0.0
      %386 = vadd.xlane.f32.xlu0 %v385
      %v387 = vpop.xlane.xlu0 %386
      %v388 = vsel %vm259, %v370, 0.0
      %389 = vadd.xlane.f32.xlu0 %v388
      %v390 = vpop.xlane.xlu0 %389
      %v391 = vsel %vm259, %v371, 0.0
      %392 = vadd.xlane.f32.xlu0 %v391
      %v393 = vpop.xlane.xlu0 %392
      %v394 = vsel %vm259, %v372, 0.0
      %395 = vadd.xlane.f32.xlu0 %v394
      %v396 = vpop.xlane.xlu0 %395
      %v397 = vsub.f32 %v251, %v348
      %v398 = vsub.f32 %v252, %v349
      %v399 = vsub.f32 %v253, %v350
      %v400 = vsub.f32 %v254, %v351
      %v401 = vsub.f32 %v255, %v352
      %v402 = vsub.f32 %v256, %v353
      %v403 = vsub.f32 %v257, %v354
      %v404 = vsub.f32 %v258, %v355
      %vm405 = vcmask 4096
      %406 = vst.msk [vmem:[%s239] sm:$0x1f] %vm405, %v397
      %407 = vst.msk [vmem:[%s239 + $0x8] sm:$0x1f] %vm405, %v398
      %408 = vst.msk [vmem:[%s239 + $0x10] sm:$0x1f] %vm405, %v399
      %409 = vst.msk [vmem:[%s239 + $0x18] sm:$0x1f] %vm405, %v400
      %410 = vst.msk [vmem:[%s239 + $0x20] sm:$0x1f] %vm405, %v401
      %411 = vst.msk [vmem:[%s239 + $0x28] sm:$0x1f] %vm405, %v402
      %412 = vst.msk [vmem:[%s239 + $0x30] sm:$0x1f] %vm405, %v403
      %413 = vst.msk [vmem:[%s239 + $0x38] sm:$0x1f] %vm405, %v404
      %v414 = vsub.f32 %v375, %v348
      %v415 = vsub.f32 %v378, %v349
      %v416 = vsub.f32 %v381, %v350
      %v417 = vsub.f32 %v384, %v351
      %v418 = vsub.f32 %v387, %v352
      %v419 = vsub.f32 %v390, %v353
      %v420 = vsub.f32 %v393, %v354
      %v421 = vsub.f32 %v396, %v355
      %422 = vst.msk [vmem:[%s249] sm:$0x1f] %vm405, %v414
      %423 = vst.msk [vmem:[%s249 + $0x8] sm:$0x1f] %vm405, %v415
      %424 = vst.msk [vmem:[%s249 + $0x10] sm:$0x1f] %vm405, %v416
      %425 = vst.msk [vmem:[%s249 + $0x18] sm:$0x1f] %vm405, %v417
      %426 = vst.msk [vmem:[%s249 + $0x20] sm:$0x1f] %vm405, %v418
      %427 = vst.msk [vmem:[%s249 + $0x28] sm:$0x1f] %vm405, %v419
      %428 = vst.msk [vmem:[%s249 + $0x30] sm:$0x1f] %vm405, %v420
      %429 = vst.msk [vmem:[%s249 + $0x38] sm:$0x1f] %vm405, %v421
      %s430 = smul.u32 8, %s20
      %p431 = scmp.lt.s32.totalorder %s19, 1
      %s432 = scalar_select %p431, %s19, 1
      %p433 = scmp.lt.s32.totalorder %s430, 7
      %s434 = scalar_select %p433, %s430, 7
      %s435 = smul.addr %s432, 8
      %s436 = sadd.s32 %s434, %s435
      %s437 = smul.addr %s436, 8
      %s438 = scalar_lea.vmem %s2, %s437
      %s439 = smul.u32 8, %s20
      %p440 = scmp.lt.s32.totalorder %s19, 1
      %s441 = scalar_select %p440, %s19, 1
      %p442 = scmp.lt.s32.totalorder %s439, 7
      %s443 = scalar_select %p442, %s439, 7
      %s444 = smul.addr %s441, 8
      %s445 = sadd.s32 %s443, %s444
      %s446 = smul.addr %s445, 8
      %s447 = scalar_lea.vmem %s3, %s446
      // Predicated region
      $region29: #{tpu_custom_call.1} parent=27 // pred_check
        %p448 = pneg %p101
      $region30: #{tpu_custom_call.1} parent=27 // pred_check_branch
        %450 = sbr.rel (%p448) target = $region32
      $region31: #{tpu_custom_call.1} parent=27 // pred_region
        %s451 = smul.u32 8, %s20
      $region32: #{tpu_custom_call.1} parent=27 // pred_fallthru
        _
      // Predicated region
      $region33: #{tpu_custom_call.1} parent=27 // pred_check
        %p452 = pneg %p129
      $region34: #{tpu_custom_call.1} parent=27 // pred_check_branch
        %454 = sbr.rel (%p452) target = $region36
      $region35: #{tpu_custom_call.1} parent=27 // pred_region
        %s455 = smul.u32 8, %s20
      $region36: #{tpu_custom_call.1} parent=27 // pred_fallthru
        _
    $region28: #{tpu_custom_call.1} parent=5 // pred_fallthru
      _
    %p456 = scmp.le.s32.totalorder 2, %s10
    // Predicated region
    $region37: #{tpu_custom_call.1} parent=5 // pred_check
      %p457 = pneg %p456
    $region38: #{tpu_custom_call.1} parent=5 // pred_check_branch
      %459 = sbr.rel (%p457) target = $region40
    $region39: #{tpu_custom_call.1} parent=5 // pred_region
      %s460 = ssub.s32 %s10, 2
      // Predicated region
      $region41: #{tpu_custom_call.1} parent=39 // pred_check
        %p461 = pneg %p107
      $region42: #{tpu_custom_call.1} parent=39 // pred_check_branch
        %463 = sbr.rel (%p461) target = $region44
      $region43: #{tpu_custom_call.1} parent=39 // pred_region
        %s464 = smul.u32 8, %s22
        %p465 = scmp.lt.s32.totalorder %s21, 1
        %s466 = scalar_select %p465, %s21, 1
        %p467 = scmp.lt.s32.totalorder %s464, 7
        %s468 = scalar_select %p467, %s464, 7
        %s469 = smul.addr %s466, 8
        %s470 = sadd.s32 %s468, %s469
        %s471 = smul.addr %s470, 8
        %s472 = scalar_lea.vmem %s2, %s471
      $region44: #{tpu_custom_call.1} parent=39 // pred_fallthru
        _
      // Predicated region
      $region45: #{tpu_custom_call.1} parent=39 // pred_check
        %p473 = pneg %p135
      $region46: #{tpu_custom_call.1} parent=39 // pred_check_branch
        %475 = sbr.rel (%p473) target = $region48
      $region47: #{tpu_custom_call.1} parent=39 // pred_region
        %s476 = smul.u32 8, %s22
        %p477 = scmp.lt.s32.totalorder %s21, 1
        %s478 = scalar_select %p477, %s21, 1
        %p479 = scmp.lt.s32.totalorder %s476, 7
        %s480 = scalar_select %p479, %s476, 7
        %s481 = smul.addr %s478, 8
        %s482 = sadd.s32 %s480, %s481
        %s483 = smul.addr %s482, 8
        %s484 = scalar_lea.vmem %s3, %s483
      $region48: #{tpu_custom_call.1} parent=39 // pred_fallthru
        _
    $region40: #{tpu_custom_call.1} parent=5 // pred_fallthru
      _
  $region6: #{tpu_custom_call.1} parent=0 // loop_footer
    %s14 = sadd.s32 1, %s10
  $region7: #{tpu_custom_call.1} parent=0 // loop_footer_branch
    %9 = sbr.rel target = $region3
  $region8: #{tpu_custom_call.1} parent=0 // loop_exit
    _

</llo_original>
